<compile_context>
chip_gen: v6e
topology: v6e:2x2x1
jax: 0.10.0
libtpu: 0.0.40
codegen_flags: <defaults>
</compile_context>

<pallas_src>
import functools

import jax
import jax.numpy as jnp
from jax import lax
from jax.experimental import pallas as pl
from jax.experimental.pallas import tpu as pltpu


def _bpr_max_row_kernel(logit_ref, rowloss_ref, *, bpreg: float):
    tm, b = logit_ref.shape                      # (TM, B) tile; B = full width
    row0 = pl.program_id(0) * tm

    logit = logit_ref[...].astype(jnp.float32)   # compute in f32 (EUP stability)

    # Global row index of each local row; rows past B are grid padding.
    g_rows = row0 + lax.broadcasted_iota(jnp.int32, (tm, 1), 0)   # (TM, 1)
    row_valid = g_rows < b                                        # (TM, 1)
    # Zero padded rows so stale/garbage edge-tile data can't produce NaN/Inf.
    logit = jnp.where(row_valid, logit, 0.0)

    # Diagonal mask from a single (1, B) lane iota vs the global row index.
    cols = lax.broadcasted_iota(jnp.int32, (1, b), 1)             # (1, B)
    diag_mask = cols == g_rows                                    # (TM, B)

    # diag(logit) per row.
    diag_vals = jnp.sum(jnp.where(diag_mask, logit, 0.0),
                        axis=1, keepdims=True)                    # (TM, 1)

    # Softmax over non-diagonal entries: -inf on the diagonal -> exp == 0.
    logit_in = jnp.where(diag_mask, -jnp.inf, logit)
    row_max = jnp.max(logit_in, axis=1, keepdims=True)            # (TM, 1)  (XLU)
    e_x = jnp.exp(logit_in - row_max)                             # (TM, B)  (EUP)

    # diff[i, j] = logit[i, i] - logit[i, j]; numerically stable logsigmoid.
    diff = diag_vals - logit
    logsig = jnp.minimum(diff, 0.0) - jnp.log1p(jnp.exp(-jnp.abs(diff)))
    w = -logsig + bpreg * logit * logit                           # (TM, B)

    # Row sums on the MXU (frees XLU/VPU slots).
    ones_col = jnp.ones((b, 1), jnp.float32)
    den = jnp.dot(e_x, ones_col, preferred_element_type=jnp.float32)      # (TM, 1)
    num = jnp.dot(w * e_x, ones_col, preferred_element_type=jnp.float32)  # (TM, 1)

    # One reciprocal per row instead of a [B, B] divide. approx=True would
    # shave a few more EUP cycles but costs ~1e-3 accuracy; exact keeps 1e-5
    # parity with the reference at negligible cost (only TM ops per tile).
    row_loss = num * pl.reciprocal(den, approx=False)
    rowloss_ref[...] = jnp.where(row_valid, row_loss, 0.0)


def _pick_tile_rows(b: int) -> int:
    """Rows per input tile: multiple of 8, <= 512, (TM, B) f32 slab <= ~1 MiB."""
    if b % 8 != 0:
        # One full-array block (a block equal to the full array dims is always
        # a legal TPU block shape); ragged B is expected to be small.
        return b
    cap = (1 * 1024 * 1024) // (4 * b)
    return max(8, min(512, b, (cap // 8) * 8))


def bpr_max_loss(logit: jax.Array, *, eps: float = 1e-24, bpreg: float = 1.0,
                 tile_rows: int | None = None) -> jax.Array:
    """Pallas TPU implementation of BPRMaxLoss.forward. Returns a f32 scalar."""
    del eps  # unused in the original forward()
    b = logit.shape[0]
    assert logit.ndim == 2 and logit.shape == (b, b), "logit must be square [B, B]"

    tm = _pick_tile_rows(b) if tile_rows is None else tile_rows
    grid = pl.cdiv(b, tm)

    rowloss = pl.pallas_call(
        functools.partial(_bpr_max_row_kernel, bpreg=bpreg),
        out_shape=jax.ShapeDtypeStruct((grid * tm, 1), jnp.float32),
        grid_spec=pltpu.PrefetchScalarGridSpec(
            num_scalar_prefetch=0,
            grid=(grid,),
            in_specs=[pl.BlockSpec((tm, b), lambda i: (i, 0))],
            out_specs=pl.BlockSpec((tm, 1), lambda i: (i, 0)),
        ),
        compiler_params=pltpu.CompilerParams(
            dimension_semantics=("parallel",),   # distinct output block per step
            vmem_limit_bytes=32 * 1024 * 1024,   # safe on v5e/v6e/v7x
        ),
    )(logit)

    # Tiny final reduction (mean over the B valid rows) in plain JAX.
    return jnp.sum(rowloss[:b, 0]) / b


def _bpr_max_loss_ref(logit: jnp.ndarray, bpreg: float = 1.0) -> jnp.ndarray:
    """Pure-JAX reference mirroring the PyTorch forward, for validation."""
    logit = logit.astype(jnp.float32)
    b = logit.shape[0]
    eye = jnp.eye(b, dtype=jnp.float32)
    logit_in = logit - eye * jnp.diag(logit)[:, None]
    logit_max = jnp.max(logit_in, axis=1, keepdims=True)
    e_x = jnp.exp(logit_in - logit_max)
    e_x = e_x - eye * jnp.diag(e_x)[:, None]
    softmax_scores = e_x / jnp.sum(e_x, axis=1, keepdims=True)
    diff = jnp.diag(logit)[:, None] - logit
    logsig = jnp.minimum(diff, 0.0) - jnp.log1p(jnp.exp(-jnp.abs(diff)))
    return jnp.mean(jnp.sum((-logsig + bpreg * logit**2) * softmax_scores, axis=1))


if __name__ == "__main__":
    # Case 1: small mini-batch (single tile).
    B = 8
    logit = jax.random.normal(jax.random.PRNGKey(0), (B, B), dtype=jnp.float32)
    loss = jax.block_until_ready(bpr_max_loss(logit, bpreg=1.0))
    ref = _bpr_max_loss_ref(logit, bpreg=1.0)
    assert jnp.allclose(loss, ref, rtol=1e-5, atol=1e-5), (loss, ref)

    # Case 2: multi-tile grid with a ragged last tile (B=200, TM=64 -> 4 steps).
    B2 = 200
    logit2 = jax.random.normal(jax.random.PRNGKey(1), (B2, B2), dtype=jnp.float32)
    loss2 = jax.block_until_ready(bpr_max_loss(logit2, bpreg=0.5, tile_rows=64))
    ref2 = _bpr_max_loss_ref(logit2, bpreg=0.5)
    assert jnp.allclose(loss2, ref2, rtol=1e-5, atol=1e-5), (loss2, ref2)

    # Case 3: B not a multiple of 8 (single full-array block fallback).
    B3 = 10
    logit3 = jax.random.normal(jax.random.PRNGKey(2), (B3, B3), dtype=jnp.float32)
    loss3 = jax.block_until_ready(bpr_max_loss(logit3, bpreg=1.0))
    ref3 = _bpr_max_loss_ref(logit3, bpreg=1.0)
    assert jnp.allclose(loss3, ref3, rtol=1e-5, atol=1e-5), (loss3, ref3)

    print("KERNEL_OK")
</pallas_src>

<mosaic_0001>
module attributes {stable_mosaic.version = 11 : i64} {
  func.func @_bpr_max_row_kernel(%arg0: i32, %arg1: memref<8x8xf32, #tpu.memory_space<vmem>>, %arg2: memref<8x1xf32, #tpu.memory_space<vmem>>) attributes {dimension_semantics = [#tpu.dimension_semantics<parallel>], iteration_bounds = array<i64: 1>, scalar_prefetch = 0 : i64, scratch_operands = 0 : i64, tpu.core_type = #tpu.core_type<tc>, window_params = [{transform_indices = @transform_0, window_bounds = array<i64: 8, 8>}, {transform_indices = @transform_1, window_bounds = array<i64: 8, 1>}]} {
    %c8_i32 = arith.constant 8 : i32
    %0 = arith.muli %arg0, %c8_i32 : i32
    %c0 = arith.constant 0 : index
    %c0_0 = arith.constant 0 : index
    %1 = vector.load %arg1[%c0, %c0_0] : memref<8x8xf32, #tpu.memory_space<vmem>>, vector<8x8xf32>
    %2 = tpu.iota {dimensions = array<i32: 0>} : vector<8x1xi32>
    %3 = vector.broadcast %0 : i32 to vector<8x1xi32>
    %4 = arith.addi %3, %2 : vector<8x1xi32>
    %c8_i32_1 = arith.constant 8 : i32
    %5 = vector.broadcast %c8_i32_1 : i32 to vector<8x1xi32>
    %6 = arith.cmpi slt, %4, %5 : vector<8x1xi32>
    %cst = arith.constant 0.000000e+00 : f32
    %7 = vector.shape_cast %6 : vector<8x1xi1> to vector<8x1xi1>
    %8 = vector.broadcast %7 : vector<8x1xi1> to vector<8x8xi1>
    %9 = vector.broadcast %cst : f32 to vector<8x8xf32>
    %10 = arith.select %8, %1, %9 : vector<8x8xi1>, vector<8x8xf32>
    %11 = tpu.iota {dimensions = array<i32: 1>} : vector<1x8xi32>
    %12 = vector.broadcast %11 : vector<1x8xi32> to vector<8x8xi32>
    %13 = vector.broadcast %4 : vector<8x1xi32> to vector<8x8xi32>
    %14 = arith.cmpi eq, %12, %13 : vector<8x8xi32>
    %cst_2 = arith.constant 0.000000e+00 : f32
    %15 = vector.broadcast %cst_2 : f32 to vector<8x8xf32>
    %16 = arith.select %14, %10, %15 : vector<8x8xi1>, vector<8x8xf32>
    %cst_3 = arith.constant dense<0.000000e+00> : vector<8xf32>
    %17 = vector.multi_reduction <add>, %16, %cst_3 [1] : vector<8x8xf32> to vector<8xf32>
    %18 = vector.shape_cast %17 : vector<8xf32> to vector<8x1xf32>
    %cst_4 = arith.constant 0xFF800000 : f32
    %19 = vector.broadcast %cst_4 : f32 to vector<8x8xf32>
    %20 = arith.select %14, %19, %10 : vector<8x8xi1>, vector<8x8xf32>
    %cst_5 = arith.constant dense<0xFF800000> : vector<8xf32>
    %21 = vector.multi_reduction <maximumf>, %20, %cst_5 [1] : vector<8x8xf32> to vector<8xf32>
    %22 = vector.shape_cast %21 : vector<8xf32> to vector<8x1xf32>
    %23 = vector.broadcast %22 : vector<8x1xf32> to vector<8x8xf32>
    %24 = arith.subf %20, %23 : vector<8x8xf32>
    %25 = math.exp %24 : vector<8x8xf32>
    %26 = vector.broadcast %18 : vector<8x1xf32> to vector<8x8xf32>
    %27 = arith.subf %26, %10 : vector<8x8xf32>
    %cst_6 = arith.constant 0.000000e+00 : f32
    %28 = vector.broadcast %cst_6 : f32 to vector<8x8xf32>
    %29 = arith.minimumf %27, %28 : vector<8x8xf32>
    %30 = math.absf %27 : vector<8x8xf32>
    %cst_7 = arith.constant 0.000000e+00 : f32
    %31 = vector.broadcast %cst_7 : f32 to vector<8x8xf32>
    %32 = arith.subf %31, %30 : vector<8x8xf32>
    %33 = math.exp %32 : vector<8x8xf32>
    %34 = math.log1p %33 : vector<8x8xf32>
    %35 = arith.subf %29, %34 : vector<8x8xf32>
    %cst_8 = arith.constant 0.000000e+00 : f32
    %36 = vector.broadcast %cst_8 : f32 to vector<8x8xf32>
    %37 = arith.subf %36, %35 : vector<8x8xf32>
    %cst_9 = arith.constant 1.000000e+00 : f32
    %38 = vector.broadcast %cst_9 : f32 to vector<8x8xf32>
    %39 = arith.mulf %38, %10 : vector<8x8xf32>
    %40 = arith.mulf %39, %10 : vector<8x8xf32>
    %41 = arith.addf %37, %40 : vector<8x8xf32>
    %cst_10 = arith.constant 1.000000e+00 : f32
    %42 = vector.broadcast %cst_10 : f32 to vector<8x1xf32>
    %cst_11 = arith.constant dense<0.000000e+00> : vector<8x1xf32>
    %43 = tpu.matmul %25, %42, %cst_11 {dimension_numbers = #tpu.dot_dimension_numbers<[1], [0], [0], [1], [0, 0, 1, 1], [], []>} : vector<8x8xf32>, vector<8x1xf32>, vector<8x1xf32> -> vector<8x1xf32>
    %44 = arith.mulf %41, %25 : vector<8x8xf32>
    %cst_12 = arith.constant dense<0.000000e+00> : vector<8x1xf32>
    %45 = tpu.matmul %44, %42, %cst_12 {dimension_numbers = #tpu.dot_dimension_numbers<[1], [0], [0], [1], [0, 0, 1, 1], [], []>} : vector<8x8xf32>, vector<8x1xf32>, vector<8x1xf32> -> vector<8x1xf32>
    %46 = tpu.reciprocal %43 : vector<8x1xf32> -> vector<8x1xf32>
    %47 = arith.mulf %45, %46 : vector<8x1xf32>
    %cst_13 = arith.constant 0.000000e+00 : f32
    %48 = vector.broadcast %cst_13 : f32 to vector<8x1xf32>
    %49 = arith.select %6, %47, %48 : vector<8x1xi1>, vector<8x1xf32>
    %c0_14 = arith.constant 0 : index
    %c0_15 = arith.constant 0 : index
    %50 = vector.load %arg2[%c0_14, %c0_15] : memref<8x1xf32, #tpu.memory_space<vmem>>, vector<8x1xf32>
    tpu.vector_store %arg2[%c0_14, %c0_15], %49 {strides = array<i32>} : memref<8x1xf32, #tpu.memory_space<vmem>>, vector<8x1xf32>,
    return
  }
  func.func @transform_0(%arg0: i32) -> (i32, i32) {
    %c0_i32 = arith.constant 0 : i32
    %c0_i32_0 = arith.constant 0 : i32
    return %arg0, %c0_i32 : i32, i32
  }
  func.func @transform_1(%arg0: i32) -> (i32, i32) {
    %c0_i32 = arith.constant 0 : i32
    %c0_i32_0 = arith.constant 0 : i32
    return %arg0, %c0_i32 : i32, i32
  }
}

</mosaic_0001>

<llo_original>
// kernel: tpu_custom_call.1
$region0: #{tpu_custom_call.1}
  #allocation0 [shape = 'u32[]', space=smem, size = 0x4, offset = 0x4, fixed_abs, tag = 'smem constant byte address 0x4 - core index']
  #allocation1 [shape = 'u32[144,128]{1,0:T(1,128)}', space=vmem, size = 0x12000, scoped, tag = 'internal scratch']
  %s0 = inlined_call_operand.hbm [shape: f32[8,8], index: 0, kind: input, shape index: {}]
  %s1 = inlined_call_operand.vmem [shape: f32[8,1], index: 1, kind: output, shape index: {}]
  %s2 = sld [smem:[#allocation0]]
  $region18: #{tpu_custom_call.1} parent=0
    _
  %s4 = ssub.s32 1, %s2
  %s5 = scalar_select 0, %s4, %s2
  $region1: #{tpu_custom_call.1} parent=0
    #allocation2 [shape = 'u8[4096]{0}', space=vmem, size = 0x1000, scoped, tag = 'input window, operand 0, single buffered']
    #allocation3 [shape = 's32[1]{0}', space=sflag, size = 0x4, scoped, tag = 'scoped memory for tpu_custom_call.1']
    %6 = vsyncpa [#allocation3], 0
    // Predicated region
    $region2: #{tpu_custom_call.1} parent=1 // pred_check
      _
    $region3: #{tpu_custom_call.1} parent=1 // pred_check_branch
      %8 = sbr.rel (0) target = $region5
    $region4: #{tpu_custom_call.1} parent=1 // pred_region
      %s10 = ssub.s32 128, 128
      %11 = vsyncadd [#allocation3], %s10
      %s13 = sshll.u32 [#allocation2], 4
      %s14 = int_to_ptr.vmem [resolvable:$true] %s13
      %16 = dma.hbm_to_vmem [thread:$0]  %s0, 128, %s14, [#allocation3]
    $region5: #{tpu_custom_call.1} parent=1 // pred_fallthru
      _
    // Predicated region
    $region6: #{tpu_custom_call.1} parent=1 // pred_check
      _
    $region7: #{tpu_custom_call.1} parent=1 // pred_check_branch
      %18 = sbr.rel (0) target = $region9
    $region8: #{tpu_custom_call.1} parent=1 // pred_region
      %19 = dma.done [#allocation3], 128
    $region9: #{tpu_custom_call.1} parent=1 // pred_fallthru
      _
    %s20 = smul.u32 0, 8
    %v21 = vld [vmem:[#allocation2] sm:$0xff]
    %v22 = vlaneseq
    %v23 = vshrl.u32 %v22, 7
    %v24 = vstv %s20
    %v25 = vadd.s32 %v24, %v23
    %vm26 = vcmp.lt.s32.totalorder %v25, 8
    %v27 = vsel %vm26, 1, 0
    %vm28 = vcmp.eq.s32.totalorder %v27, 1
    %v29 = vsel %vm28, %v21, 0.0
    %v30 = vlaneseq
    %v31 = vand.u32 %v30, 127
    %vm32 = vcmp.eq.s32.totalorder %v31, %v25
    %v33 = vsel %vm32, %v29, 0.0
    %vm34 = vcmask 64512
    %v35 = vsel %vm34, %v33, 0.0
    %36 = vadd.xlane.f32.xlu0 %v35
    %v37 = vpop.xlane.xlu0 %36
    %v38 = vsel %vm32, -inf, %v29
    %v39 = vsel %vm34, %v38, -inf
    %40 = vmax.xlane.f32.xlu0 %v39
    %v41 = vpop.xlane.xlu0 %40
    %v42 = vsub.f32 %v38, %v41
    %v43 = vmul.f32 %v42, 1.442695
    %v44 = vpow.pop %v43
    %v45 = vsub.f32 %v37, %v29
    %v46 = vmin.f32 %v45, 0.0
    %v47 = vand.u32 2147483647, %v45
    %v48 = vsub.f32 0.0, %v47
    %v49 = vmul.f32 %v48, 1.442695
    %v50 = vpow.pop %v49
    %v51 = vadd.f32 %v50, 1.0
    %v52 = vlog2.pop %v51
    %v53 = vmul.f32 %v52, 0.6931472
    %v54 = vmul.f32 -0.5, %v50
    %v55 = vadd.f32 %v54, 1.0
    %v56 = vmul.f32 %v55, %v50
    %v57 = vand.u32 2147483647, %v50
    %vm58 = vcmp.lt.f32.partialorder %v57, 0.0004427343
    %v59 = vsel %vm58, %v56, %v53
    %v60 = vsub.f32 %v46, %v59
    %v61 = vsub.f32 0.0, %v60
    %v62 = vmul.f32 %v29, %v29
    %v63 = vadd.f32 %v61, %v62
    %v65 = vsel %vm34, %v44, 0
    %67 = vmatprep.subr.mxu0 0.0
    %68 = vmatpush1.msra.mxu0 0.0
    %69 = vmatprep.subr.mxu0 0.0
    %70 = vmatpush1.msra.mxu0 0.0
    %71 = vmatprep.subr.mxu0 0.0
    %72 = vmatpush1.msra.mxu0 0.0
    %73 = vmatprep.subr.mxu0 0.0
    %74 = vmatpush1.msra.mxu0 0.0
    %75 = vmatprep.subr.mxu0 0.0
    %76 = vmatpush1.msra.mxu0 0.0
    %77 = vmatprep.subr.mxu0 0.0
    %78 = vmatpush1.msra.mxu0 0.0
    %79 = vmatprep.subr.mxu0 0.0
    %80 = vmatpush1.msra.mxu0 0.0
    %81 = vmatprep.subr.mxu0 0.0
    %82 = vmatpush1.msra.mxu0 0.0
    %83 = vmatprep.subr.mxu0 0.0
    %84 = vmatpush1.msra.mxu0 0.0
    %85 = vmatprep.subr.mxu0 0.0
    %86 = vmatpush1.msra.mxu0 0.0
    %87 = vmatprep.subr.mxu0 0.0
    %88 = vmatpush1.msra.mxu0 0.0
    %89 = vmatprep.subr.mxu0 0.0
    %90 = vmatpush1.msra.mxu0 0.0
    %91 = vmatprep.subr.mxu0 0.0
    %92 = vmatpush1.msra.mxu0 0.0
    %93 = vmatprep.subr.mxu0 0.0
    %94 = vmatpush1.msra.mxu0 0.0
    %95 = vmatprep.subr.mxu0 0.0
    %96 = vmatpush1.msra.mxu0 0.0
    %97 = vmatprep.subr.mxu0 0.0
    %98 = vmatpush1.msra.mxu0 1.0
    %99 = vmatprep.subr.mxu0 0.0
    %100 = vmatpush2.msra.mxu0 0.0
    %101 = vmatprep.subr.mxu0 0.0
    %102 = vmatpush2.msra.mxu0 0.0
    %103 = vmatprep.subr.mxu0 0.0
    %104 = vmatpush2.msra.mxu0 0.0
    %105 = vmatprep.subr.mxu0 0.0
    %106 = vmatpush2.msra.mxu0 0.0
    %107 = vmatprep.subr.mxu0 0.0
    %108 = vmatpush2.msra.mxu0 0.0
    %109 = vmatprep.subr.mxu0 0.0
    %110 = vmatpush2.msra.mxu0 0.0
    %111 = vmatprep.subr.mxu0 0.0
    %112 = vmatpush2.msra.mxu0 0.0
    %113 = vmatprep.subr.mxu0 0.0
    %114 = vmatpush2.msra.mxu0 0.0
    %115 = vmatprep.subr.mxu0 0.0
    %116 = vmatpush2.msra.mxu0 0.0
    %117 = vmatprep.subr.mxu0 0.0
    %118 = vmatpush2.msra.mxu0 0.0
    %119 = vmatprep.subr.mxu0 0.0
    %120 = vmatpush2.msra.mxu0 0.0
    %121 = vmatprep.subr.mxu0 0.0
    %122 = vmatpush2.msra.mxu0 0.0
    %123 = vmatprep.subr.mxu0 0.0
    %124 = vmatpush2.msra.mxu0 0.0
    %125 = vmatprep.subr.mxu0 0.0
    %126 = vmatpush2.msra.mxu0 0.0
    %127 = vmatprep.subr.mxu0 0.0
    %128 = vmatpush2.msra.mxu0 0.0
    %129 = vmatprep.subr.mxu0 0.0
    %130 = vmatpush2.msra.mxu0 0.0
    %131 = vmatprep.mubr.f32.mxu0 0.0
    %132 = vmatmul.mubr.f32.gmra.mxu0 %v65
    %v133 = vpop.f32.mrf.mxu0
    %v134 = vadd.f32 0.0, %v133
    %v135 = vpop.f32.mrf.mxu0
    %136 = vdwg.mxu0
    %v137 = vmul.f32 %v63, %v44
    %v139 = vsel %vm34, %v137, 0
    %141 = vmatprep.subr.mxu0 0.0
    %142 = vmatpush1.msra.mxu0 0.0
    %143 = vmatprep.subr.mxu0 0.0
    %144 = vmatpush1.msra.mxu0 0.0
    %145 = vmatprep.subr.mxu0 0.0
    %146 = vmatpush1.msra.mxu0 0.0
    %147 = vmatprep.subr.mxu0 0.0
    %148 = vmatpush1.msra.mxu0 0.0
    %149 = vmatprep.subr.mxu0 0.0
    %150 = vmatpush1.msra.mxu0 0.0
    %151 = vmatprep.subr.mxu0 0.0
    %152 = vmatpush1.msra.mxu0 0.0
    %153 = vmatprep.subr.mxu0 0.0
    %154 = vmatpush1.msra.mxu0 0.0
    %155 = vmatprep.subr.mxu0 0.0
    %156 = vmatpush1.msra.mxu0 0.0
    %157 = vmatprep.subr.mxu0 0.0
    %158 = vmatpush1.msra.mxu0 0.0
    %159 = vmatprep.subr.mxu0 0.0
    %160 = vmatpush1.msra.mxu0 0.0
    %161 = vmatprep.subr.mxu0 0.0
    %162 = vmatpush1.msra.mxu0 0.0
    %163 = vmatprep.subr.mxu0 0.0
    %164 = vmatpush1.msra.mxu0 0.0
    %165 = vmatprep.subr.mxu0 0.0
    %166 = vmatpush1.msra.mxu0 0.0
    %167 = vmatprep.subr.mxu0 0.0
    %168 = vmatpush1.msra.mxu0 0.0
    %169 = vmatprep.subr.mxu0 0.0
    %170 = vmatpush1.msra.mxu0 0.0
    %171 = vmatprep.subr.mxu0 0.0
    %172 = vmatpush1.msra.mxu0 1.0
    %173 = vmatprep.subr.mxu0 0.0
    %174 = vmatpush2.msra.mxu0 0.0
    %175 = vmatprep.subr.mxu0 0.0
    %176 = vmatpush2.msra.mxu0 0.0
    %177 = vmatprep.subr.mxu0 0.0
    %178 = vmatpush2.msra.mxu0 0.0
    %179 = vmatprep.subr.mxu0 0.0
    %180 = vmatpush2.msra.mxu0 0.0
    %181 = vmatprep.subr.mxu0 0.0
    %182 = vmatpush2.msra.mxu0 0.0
    %183 = vmatprep.subr.mxu0 0.0
    %184 = vmatpush2.msra.mxu0 0.0
    %185 = vmatprep.subr.mxu0 0.0
    %186 = vmatpush2.msra.mxu0 0.0
    %187 = vmatprep.subr.mxu0 0.0
    %188 = vmatpush2.msra.mxu0 0.0
    %189 = vmatprep.subr.mxu0 0.0
    %190 = vmatpush2.msra.mxu0 0.0
    %191 = vmatprep.subr.mxu0 0.0
    %192 = vmatpush2.msra.mxu0 0.0
    %193 = vmatprep.subr.mxu0 0.0
    %194 = vmatpush2.msra.mxu0 0.0
    %195 = vmatprep.subr.mxu0 0.0
    %196 = vmatpush2.msra.mxu0 0.0
    %197 = vmatprep.subr.mxu0 0.0
    %198 = vmatpush2.msra.mxu0 0.0
    %199 = vmatprep.subr.mxu0 0.0
    %200 = vmatpush2.msra.mxu0 0.0
    %201 = vmatprep.subr.mxu0 0.0
    %202 = vmatpush2.msra.mxu0 0.0
    %203 = vmatprep.subr.mxu0 0.0
    %204 = vmatpush2.msra.mxu0 0.0
    %205 = vmatprep.mubr.f32.mxu0 0.0
    %206 = vmatmul.mubr.f32.gmra.mxu0 %v139
    %v207 = vpop.f32.mrf.mxu0
    %v208 = vadd.f32 0.0, %v207
    %v209 = vpop.f32.mrf.mxu0
    %210 = vdwg.mxu0
    %v211 = vrcp.pop %v134
    %v212 = vmul.f32 %v208, %v211
    %v213 = vsel %vm26, %v212, 0.0
    %vm214 = vcmask 7168
    %215 = vst.msk [vmem:[%s1] sm:$0xff] %vm214, %v213
    // Predicated region
    $region10: #{tpu_custom_call.1} parent=1 // pred_check
      _
    $region11: #{tpu_custom_call.1} parent=1 // pred_check_branch
      %217 = sbr.rel (0) target = $region13
    $region12: #{tpu_custom_call.1} parent=1 // pred_region
      _
    $region13: #{tpu_custom_call.1} parent=1 // pred_fallthru
      _
    // Predicated region
    $region14: #{tpu_custom_call.1} parent=1 // pred_check
      _
    $region15: #{tpu_custom_call.1} parent=1 // pred_check_branch
      %219 = sbr.rel (0) target = $region17
    $region16: #{tpu_custom_call.1} parent=1 // pred_region
      _
    $region17: #{tpu_custom_call.1} parent=1 // pred_fallthru
      _
    %220 = vsyncpa [#allocation3], 1

</llo_original>
